<compile_context>
chip_gen: v6e
topology: v6e:2x2x1
jax: 0.10.0
libtpu: 0.0.40
codegen_flags: <defaults>
</compile_context>

<pallas_src>
import functools

import jax
import jax.numpy as jnp
from jax import lax
from jax.experimental import pallas as pl
from jax.experimental.pallas import tpu as pltpu

HIDDEN = 256
EPS = 1e-12
DROP_P = 0.1


def _dropout_keep_mask(seed_u32, row_start, shape, p):
    """Keep-mask (P(keep)=1-p) from a counter-based hash of the global element
    index and a seed.  Pure VPU ops -> works in interpret mode and on TPU, and
    is independent of how rows are tiled across grid steps / TensorCores."""
    rows = lax.broadcasted_iota(jnp.int32, shape, 0) + row_start
    cols = lax.broadcasted_iota(jnp.int32, shape, 1)
    r = rows.astype(jnp.uint32)
    c = cols.astype(jnp.uint32)
    x = (r * jnp.uint32(0x9E3779B1)) ^ (c * jnp.uint32(0x85EBCA77)) ^ seed_u32
    # lowbias32-style finalizer (good avalanche, 2 mul + 3 xor-shift).
    x = x ^ (x >> 16)
    x = x * jnp.uint32(0x7FEB352D)
    x = x ^ (x >> 15)
    x = x * jnp.uint32(0x846CA68B)
    x = x ^ (x >> 16)
    thresh = jnp.uint32(int(p * 4294967296.0))   # keep iff bits >= p * 2^32
    return x >= thresh


def _add_ln_body(y, w_ref, b_ref, o_ref):
    """LayerNorm over the last dim of y (f32), apply affine, write out."""
    inv_h = jnp.float32(1.0 / HIDDEN)
    mean = jnp.sum(y, axis=-1, keepdims=True) * inv_h
    centered = y - mean
    var = jnp.sum(centered * centered, axis=-1, keepdims=True) * inv_h
    inv = lax.rsqrt(var + jnp.float32(EPS))
    w = w_ref[...].astype(jnp.float32)   # (1, H) broadcasts over rows
    b = b_ref[...].astype(jnp.float32)
    o_ref[...] = (centered * inv * w + b).astype(o_ref.dtype)


def _add_ln_kernel(x_ref, res_ref, w_ref, b_ref, o_ref):
    """Eval path: dropout is the identity."""
    y = x_ref[...].astype(jnp.float32) + res_ref[...].astype(jnp.float32)
    _add_ln_body(y, w_ref, b_ref, o_ref)


def _dropout_add_ln_kernel(seed_ref, x_ref, res_ref, w_ref, b_ref, o_ref, *,
                           p, row_tile):
    """Training path: inverted dropout with hash-based bits, then add + LN."""
    x = x_ref[...].astype(jnp.float32)
    row0 = pl.program_id(0) * row_tile
    keep = _dropout_keep_mask(seed_ref[0].astype(jnp.uint32), row0, x.shape, p)
    x = jnp.where(keep, x * jnp.float32(1.0 / (1.0 - p)), jnp.float32(0.0))
    y = x + res_ref[...].astype(jnp.float32)
    _add_ln_body(y, w_ref, b_ref, o_ref)


def _pick_num_tiles(rows, requested):
    """Default 2 tiles: 1 per TensorCore on v7x, a 2-deep pipeline on v5e/v6e.
    Falls back to 1 if the row count does not split into (8,·)-aligned tiles."""
    n = 2 if requested is None else int(requested)
    if n < 1 or rows % n != 0 or (rows // n) % 8 != 0:
        n = 1
    return n


def dropout_add_layernorm(x278, x275, weight, bias, *, seed=0, training=False,
                          num_row_tiles=None):
    """x278: dropout input, x275: residual, both (B, S, H). Returns (B, S, H).

    Training-mode dropout uses a hash-based RNG keyed on (seed, row, col); the
    mask is reproducible across tilings/generations.  Callers should mix a
    per-call counter into `seed` to get fresh masks every step.
    """
    B, S, H = x278.shape
    assert H == HIDDEN
    rows = B * S
    n_tiles = _pick_num_tiles(rows, num_row_tiles)
    row_tile = rows // n_tiles

    x2d = x278.reshape(rows, H)
    r2d = x275.reshape(rows, H)
    w2d = weight.reshape(1, H)
    b2d = bias.reshape(1, H)

    compiler_params = pltpu.CompilerParams(
        dimension_semantics=("parallel",))   # shards row tiles across TCs on v7x
    out_shape = jax.ShapeDtypeStruct((rows, H), x278.dtype)

    if training:
        seed_arr = jnp.asarray([seed], dtype=jnp.int32)
        kernel = functools.partial(_dropout_add_ln_kernel,
                                   p=DROP_P, row_tile=row_tile)
        out = pl.pallas_call(
            kernel,
            out_shape=out_shape,
            grid_spec=pltpu.PrefetchScalarGridSpec(
                num_scalar_prefetch=1,  # seed -> SMEM
                grid=(n_tiles,),
                in_specs=[
                    pl.BlockSpec((row_tile, H), lambda i, seed: (i, 0)),  # x278
                    pl.BlockSpec((row_tile, H), lambda i, seed: (i, 0)),  # x275
                    pl.BlockSpec((1, H), lambda i, seed: (0, 0)),         # weight
                    pl.BlockSpec((1, H), lambda i, seed: (0, 0)),         # bias
                ],
                out_specs=pl.BlockSpec((row_tile, H), lambda i, seed: (i, 0)),
            ),
            compiler_params=compiler_params,
        )(seed_arr, x2d, r2d, w2d, b2d)
    else:
        # Eval mode: no seed / no scalar prefetch at all.
        out = pl.pallas_call(
            _add_ln_kernel,
            out_shape=out_shape,
            grid_spec=pl.GridSpec(
                grid=(n_tiles,),
                in_specs=[
                    pl.BlockSpec((row_tile, H), lambda i: (i, 0)),  # x278
                    pl.BlockSpec((row_tile, H), lambda i: (i, 0)),  # x275
                    pl.BlockSpec((1, H), lambda i: (0, 0)),         # weight
                    pl.BlockSpec((1, H), lambda i: (0, 0)),         # bias
                ],
                out_specs=pl.BlockSpec((row_tile, H), lambda i: (i, 0)),
            ),
            compiler_params=compiler_params,
        )(x2d, r2d, w2d, b2d)

    return out.reshape(B, S, H)


def _layernorm_ref(y, weight, bias):
    mean = jnp.mean(y, axis=-1, keepdims=True)
    var = jnp.mean((y - mean) ** 2, axis=-1, keepdims=True)
    return (y - mean) * lax.rsqrt(var + EPS) * weight + bias


if __name__ == "__main__":
    key = jax.random.PRNGKey(0)
    k1, k2 = jax.random.split(key)

    B, S, H = 1, 384, HIDDEN
    x278 = jax.random.normal(k1, (B, S, H), dtype=jnp.float32)
    x275 = jax.random.normal(k2, (B, S, H), dtype=jnp.float32)

    # LayerNorm affine params (PyTorch default init: ones / zeros).
    ln_weight = jnp.ones((H,), dtype=jnp.float32)
    ln_bias = jnp.zeros((H,), dtype=jnp.float32)

    # --- Eval mode (dropout = identity): check against a pure-JAX reference.
    out = dropout_add_layernorm(x278, x275, ln_weight, ln_bias,
                                seed=0, training=False)
    jax.block_until_ready(out)
    ref = _layernorm_ref(x278 + x275, ln_weight, ln_bias)
    assert jnp.allclose(out, ref, atol=2e-5, rtol=2e-5)

    # --- Training mode: the hash-based mask is deterministic, so we can build
    # an exact pure-JAX reference with the same mask and compare.
    seed = 1234
    out_tr = dropout_add_layernorm(x278, x275, ln_weight, ln_bias,
                                   seed=seed, training=True)
    jax.block_until_ready(out_tr)

    seed_u32 = jnp.asarray(seed, jnp.int32).astype(jnp.uint32)
    keep = _dropout_keep_mask(seed_u32, jnp.int32(0), (B * S, H), DROP_P)
    keep = keep.reshape(B, S, H)
    x_drop = jnp.where(keep, x278 * jnp.float32(1.0 / (1.0 - DROP_P)),
                       jnp.float32(0.0))
    ref_tr = _layernorm_ref(x_drop + x275, ln_weight, ln_bias)
    assert out_tr.shape == (B, S, H)
    assert bool(jnp.all(jnp.isfinite(out_tr)))
    assert jnp.allclose(out_tr, ref_tr, atol=2e-5, rtol=2e-5)

    print("KERNEL_OK")
</pallas_src>

<mosaic_0001>
module attributes {stable_mosaic.version = 11 : i64} {
  func.func @_add_ln_kernel(%arg0: i32, %arg1: memref<192x256xf32, #tpu.memory_space<vmem>>, %arg2: memref<192x256xf32, #tpu.memory_space<vmem>>, %arg3: memref<1x256xf32, #tpu.memory_space<vmem>>, %arg4: memref<1x256xf32, #tpu.memory_space<vmem>>, %arg5: memref<192x256xf32, #tpu.memory_space<vmem>>) attributes {dimension_semantics = [#tpu.dimension_semantics<parallel>], iteration_bounds = array<i64: 2>, scalar_prefetch = 0 : i64, scratch_operands = 0 : i64, tpu.core_type = #tpu.core_type<tc>, window_params = [{transform_indices = @transform_0, window_bounds = array<i64: 192, 256>}, {transform_indices = @transform_1, window_bounds = array<i64: 192, 256>}, {pipeline_mode = #tpu.pipeline_mode<synchronous>, transform_indices = @transform_2, window_bounds = array<i64: 1, 256>}, {pipeline_mode = #tpu.pipeline_mode<synchronous>, transform_indices = @transform_3, window_bounds = array<i64: 1, 256>}, {transform_indices = @transform_4, window_bounds = array<i64: 192, 256>}]} {
    %c0 = arith.constant 0 : index
    %c0_0 = arith.constant 0 : index
    %0 = vector.load %arg1[%c0, %c0_0] : memref<192x256xf32, #tpu.memory_space<vmem>>, vector<192x256xf32>
    %c0_1 = arith.constant 0 : index
    %c0_2 = arith.constant 0 : index
    %1 = vector.load %arg2[%c0_1, %c0_2] : memref<192x256xf32, #tpu.memory_space<vmem>>, vector<192x256xf32>
    %2 = arith.addf %0, %1 : vector<192x256xf32>
    %cst = arith.constant dense<0.000000e+00> : vector<192xf32>
    %3 = vector.multi_reduction <add>, %2, %cst [1] : vector<192x256xf32> to vector<192xf32>
    %4 = vector.shape_cast %3 : vector<192xf32> to vector<192x1xf32>
    %cst_3 = arith.constant 3.906250e-03 : f32
    %5 = vector.broadcast %cst_3 : f32 to vector<192x1xf32>
    %6 = arith.mulf %4, %5 : vector<192x1xf32>
    %7 = vector.broadcast %6 : vector<192x1xf32> to vector<192x256xf32>
    %8 = arith.subf %2, %7 : vector<192x256xf32>
    %9 = arith.mulf %8, %8 : vector<192x256xf32>
    %cst_4 = arith.constant dense<0.000000e+00> : vector<192xf32>
    %10 = vector.multi_reduction <add>, %9, %cst_4 [1] : vector<192x256xf32> to vector<192xf32>
    %11 = vector.shape_cast %10 : vector<192xf32> to vector<192x1xf32>
    %cst_5 = arith.constant 3.906250e-03 : f32
    %12 = vector.broadcast %cst_5 : f32 to vector<192x1xf32>
    %13 = arith.mulf %11, %12 : vector<192x1xf32>
    %cst_6 = arith.constant 9.99999996E-13 : f32
    %14 = vector.broadcast %cst_6 : f32 to vector<192x1xf32>
    %15 = arith.addf %13, %14 : vector<192x1xf32>
    %16 = math.rsqrt %15 : vector<192x1xf32>
    %c0_7 = arith.constant 0 : index
    %c0_8 = arith.constant 0 : index
    %17 = vector.load %arg3[%c0_7, %c0_8] : memref<1x256xf32, #tpu.memory_space<vmem>>, vector<1x256xf32>
    %c0_9 = arith.constant 0 : index
    %c0_10 = arith.constant 0 : index
    %18 = vector.load %arg4[%c0_9, %c0_10] : memref<1x256xf32, #tpu.memory_space<vmem>>, vector<1x256xf32>
    %19 = vector.broadcast %16 : vector<192x1xf32> to vector<192x256xf32>
    %20 = arith.mulf %8, %19 : vector<192x256xf32>
    %21 = vector.broadcast %17 : vector<1x256xf32> to vector<192x256xf32>
    %22 = arith.mulf %20, %21 : vector<192x256xf32>
    %23 = vector.broadcast %18 : vector<1x256xf32> to vector<192x256xf32>
    %24 = arith.addf %22, %23 : vector<192x256xf32>
    %c0_11 = arith.constant 0 : index
    %c0_12 = arith.constant 0 : index
    %25 = vector.load %arg5[%c0_11, %c0_12] : memref<192x256xf32, #tpu.memory_space<vmem>>, vector<192x256xf32>
    tpu.vector_store %arg5[%c0_11, %c0_12], %24 {strides = array<i32>} : memref<192x256xf32, #tpu.memory_space<vmem>>, vector<192x256xf32>,
    return
  }
  func.func @transform_0(%arg0: i32) -> (i32, i32) {
    %c0_i32 = arith.constant 0 : i32
    %c0_i32_0 = arith.constant 0 : i32
    return %arg0, %c0_i32 : i32, i32
  }
  func.func @transform_1(%arg0: i32) -> (i32, i32) {
    %c0_i32 = arith.constant 0 : i32
    %c0_i32_0 = arith.constant 0 : i32
    return %arg0, %c0_i32 : i32, i32
  }
  func.func @transform_2(%arg0: i32) -> (i32, i32) {
    %c0_i32 = arith.constant 0 : i32
    %c0_i32_0 = arith.constant 0 : i32
    %c0_i32_1 = arith.constant 0 : i32
    return %c0_i32, %c0_i32_0 : i32, i32
  }
  func.func @transform_3(%arg0: i32) -> (i32, i32) {
    %c0_i32 = arith.constant 0 : i32
    %c0_i32_0 = arith.constant 0 : i32
    %c0_i32_1 = arith.constant 0 : i32
    return %c0_i32, %c0_i32_0 : i32, i32
  }
  func.func @transform_4(%arg0: i32) -> (i32, i32) {
    %c0_i32 = arith.constant 0 : i32
    %c0_i32_0 = arith.constant 0 : i32
    return %arg0, %c0_i32 : i32, i32
  }
}

</mosaic_0001>

<llo_original>
// kernel: tpu_custom_call.1
$region0: #{tpu_custom_call.1}
  #allocation0 [shape = 'u32[]', space=smem, size = 0x4, offset = 0x4, fixed_abs, tag = 'smem constant byte address 0x4 - core index']
  #allocation1 [shape = 'u32[144,128]{1,0:T(1,128)}', space=vmem, size = 0x12000, scoped, tag = 'internal scratch']
  %s0 = inlined_call_operand.hbm [shape: f32[384,256], index: 0, kind: input, shape index: {}]
  %s1 = inlined_call_operand.hbm [shape: f32[384,256], index: 1, kind: input, shape index: {}]
  %s2 = inlined_call_operand.vmem [shape: f32[1,256], index: 2, kind: input, shape index: {}]
  %s3 = inlined_call_operand.vmem [shape: f32[1,256], index: 3, kind: input, shape index: {}]
  %s4 = inlined_call_operand.hbm [shape: f32[384,256], index: 4, kind: output, shape index: {}]
  %s5 = sld [smem:[#allocation0]]
  $region57: #{tpu_custom_call.1} parent=0
    _
  %s7 = ssub.s32 1, %s5
  %s8 = scalar_select 0, %s7, %s5
  $region1: #{tpu_custom_call.1} parent=0
    #allocation2 [shape = 'u8[393216]{0}', space=vmem, size = 0x60000, scoped, tag = 'input window, operand 0']
    #allocation3 [shape = 's32[2]{0}', space=sflag, size = 0x8, scoped, tag = 'scoped memory for tpu_custom_call.1']
    #allocation4 [shape = 's32[2]{0}', space=sflag, size = 0x8, scoped, tag = 'scoped memory for tpu_custom_call.1']
    #allocation5 [shape = 'u8[393216]{0}', space=vmem, size = 0x60000, scoped, tag = 'input window, operand 1']
    #allocation6 [shape = 's32[2]{0}', space=sflag, size = 0x8, scoped, tag = 'scoped memory for tpu_custom_call.1']
    #allocation7 [shape = 'u8[393216]{0}', space=vmem, size = 0x60000, scoped, tag = 'output window, operand 0']
    %9 = vsyncpa [#allocation3], 0
    %s10 = scalar_lea.sflag [#allocation3], 1
    %11 = vsyncpa %s10, 0
    %12 = vsyncpa [#allocation6], 0
    %s13 = scalar_lea.sflag [#allocation6], 1
    %14 = vsyncpa %s13, 0
    %15 = vsyncpa [#allocation4], 0
    %s16 = scalar_lea.sflag [#allocation4], 1
    %17 = vsyncpa %s16, 0
    loop: start=0, step=1, limit=4
    $region2: #{tpu_custom_call.1} parent=1 // loop_pre_header
      _
    $region3: #{tpu_custom_call.1} parent=1 // loop_header
      %s19 = sphi 0, %s23
      %p20 = scmp.ge.s32.totalorder %s19, 4
      %s29 = sphi 0, %s31
      %s32 = sphi 0, %s29
      %s33 = sphi 0, %s32
      %s49 = sphi 0, %s33
      %s55 = sphi 0, %s57
      %s58 = sphi 0, %s55
      %s59 = sphi 0, %s58
      %s75 = sphi 0, %s59
      %s79 = sphi 0, %s79
      %s81 = sphi 0, %s79
      %s82 = sphi 0, %s81
      %s96 = sphi 0, %s82
      %s100 = sphi 0, %s100
      %s102 = sphi 0, %s100
      %s103 = sphi 0, %s102
      %s117 = sphi 0, %s103
      %s123 = sphi 0, %s125
      %s126 = sphi 0, %s123
      %s127 = sphi 0, %s126
      %s143 = sphi 0, %s127
    $region4: #{tpu_custom_call.1} parent=1 // loop_header_branch
      %22 = sbr.rel (%p20) target = $region8
    $region5: #{tpu_custom_call.1} parent=1 // loop_body
      %s24 = ssub.s32 %s19, 1
      %s25 = ssub.s32 %s19, 2
      %s26 = sadd.s32 %s19, 1
      %s27 = ssub.s32 %s19, %s26
      %p28 = scmp.eq.s32.totalorder %s27, 0
      %s30 = sadd.s32 %s29, 1
      %s31 = scalar_select %p28, %s29, %s30
      %p34 = pneg %p28
      %p35 = scmp.eq.s32.totalorder %s19, 1
      %p36 = por %p34, %p35
      %p37 = scmp.ne.s32.totalorder %s29, %s32
      %p38 = scmp.eq.s32.totalorder %s19, 0
      %p39 = por %p37, %p38
      %p40 = scmp.ne.s32.totalorder %s29, %s32
      %p41 = scmp.eq.s32.totalorder %s24, 1
      %p42 = por %p40, %p41
      %p43 = scmp.ne.s32.totalorder %s32, %s33
      %p44 = scmp.eq.s32.totalorder %s24, 0
      %p45 = por %p43, %p44
      %p46 = scmp.ne.s32.totalorder %s32, %s33
      %p47 = scmp.eq.s32.totalorder %s25, 1
      %p48 = por %p46, %p47
      %p50 = scmp.ne.s32.totalorder %s33, %s49
      %p51 = scmp.eq.s32.totalorder %s25, 0
      %p52 = por %p50, %p51
      %s53 = ssub.s32 %s19, %s26
      %p54 = scmp.eq.s32.totalorder %s53, 0
      %s56 = sadd.s32 %s55, 1
      %s57 = scalar_select %p54, %s55, %s56
      %p60 = pneg %p54
      %p61 = scmp.eq.s32.totalorder %s19, 1
      %p62 = por %p60, %p61
      %p63 = scmp.ne.s32.totalorder %s55, %s58
      %p64 = scmp.eq.s32.totalorder %s19, 0
      %p65 = por %p63, %p64
      %p66 = scmp.ne.s32.totalorder %s55, %s58
      %p67 = scmp.eq.s32.totalorder %s24, 1
      %p68 = por %p66, %p67
      %p69 = scmp.ne.s32.totalorder %s58, %s59
      %p70 = scmp.eq.s32.totalorder %s24, 0
      %p71 = por %p69, %p70
      %p72 = scmp.ne.s32.totalorder %s58, %s59
      %p73 = scmp.eq.s32.totalorder %s25, 1
      %p74 = por %p72, %p73
      %p76 = scmp.ne.s32.totalorder %s59, %s75
      %p77 = scmp.eq.s32.totalorder %s25, 0
      %p78 = por %p76, %p77
      %s80 = sadd.s32 %s79, 1
      %p83 = scmp.eq.s32.totalorder %s19, 1
      %p84 = scmp.ne.s32.totalorder %s79, %s81
      %p85 = scmp.eq.s32.totalorder %s19, 0
      %p86 = por %p84, %p85
      %p87 = scmp.ne.s32.totalorder %s79, %s81
      %p88 = scmp.eq.s32.totalorder %s24, 1
      %p89 = por %p87, %p88
      %p90 = scmp.ne.s32.totalorder %s81, %s82
      %p91 = scmp.eq.s32.totalorder %s24, 0
      %p92 = por %p90, %p91
      %p93 = scmp.ne.s32.totalorder %s81, %s82
      %p94 = scmp.eq.s32.totalorder %s25, 1
      %p95 = por %p93, %p94
      %p97 = scmp.ne.s32.totalorder %s82, %s96
      %p98 = scmp.eq.s32.totalorder %s25, 0
      %p99 = por %p97, %p98
      %s101 = sadd.s32 %s100, 1
      %p104 = scmp.eq.s32.totalorder %s19, 1
      %p105 = scmp.ne.s32.totalorder %s100, %s102
      %p106 = scmp.eq.s32.totalorder %s19, 0
      %p107 = por %p105, %p106
      %p108 = scmp.ne.s32.totalorder %s100, %s102
      %p109 = scmp.eq.s32.totalorder %s24, 1
      %p110 = por %p108, %p109
      %p111 = scmp.ne.s32.totalorder %s102, %s103
      %p112 = scmp.eq.s32.totalorder %s24, 0
      %p113 = por %p111, %p112
      %p114 = scmp.ne.s32.totalorder %s102, %s103
      %p115 = scmp.eq.s32.totalorder %s25, 1
      %p116 = por %p114, %p115
      %p118 = scmp.ne.s32.totalorder %s103, %s117
      %p119 = scmp.eq.s32.totalorder %s25, 0
      %p120 = por %p118, %p119
      %s121 = ssub.s32 %s19, %s26
      %p122 = scmp.eq.s32.totalorder %s121, 0
      %s124 = sadd.s32 %s123, 1
      %s125 = scalar_select %p122, %s123, %s124
      %p128 = pneg %p122
      %p129 = scmp.eq.s32.totalorder %s19, 1
      %p130 = por %p128, %p129
      %p131 = scmp.ne.s32.totalorder %s123, %s126
      %p132 = scmp.eq.s32.totalorder %s19, 0
      %p133 = por %p131, %p132
      %p134 = scmp.ne.s32.totalorder %s123, %s126
      %p135 = scmp.eq.s32.totalorder %s24, 1
      %p136 = por %p134, %p135
      %p137 = scmp.ne.s32.totalorder %s126, %s127
      %p138 = scmp.eq.s32.totalorder %s24, 0
      %p139 = por %p137, %p138
      %p140 = scmp.ne.s32.totalorder %s126, %s127
      %p141 = scmp.eq.s32.totalorder %s25, 1
      %p142 = por %p140, %p141
      %p144 = scmp.ne.s32.totalorder %s127, %s143
      %p145 = scmp.eq.s32.totalorder %s25, 0
      %p146 = por %p144, %p145
      %p147 = scmp.le.s32.totalorder 1, %s19
      %p148 = scmp.lt.s32.totalorder %s19, 3
      %p149 = pnand %p147, %p148
      %p150 = pneg %p149
      // Predicated region
      $region9: #{tpu_custom_call.1} parent=5 // pred_check
        _
      $region10: #{tpu_custom_call.1} parent=5 // pred_check_branch
        %152 = sbr.rel (%p149) target = $region12
      $region11: #{tpu_custom_call.1} parent=5 // pred_region
        %s153 = ssub.s32 %s19, 1
        // Predicated region
        $region13: #{tpu_custom_call.1} parent=11 // pred_check
          %p154 = pneg %p92
        $region14: #{tpu_custom_call.1} parent=11 // pred_check_branch
          %156 = sbr.rel (%p154) target = $region16
        $region15: #{tpu_custom_call.1} parent=11 // pred_region
          _
        $region16: #{tpu_custom_call.1} parent=11 // pred_fallthru
          _
        // Predicated region
        $region17: #{tpu_custom_call.1} parent=11 // pred_check
          %p157 = pneg %p113
        $region18: #{tpu_custom_call.1} parent=11 // pred_check_branch
          %159 = sbr.rel (%p157) target = $region20
        $region19: #{tpu_custom_call.1} parent=11 // pred_region
          _
        $region20: #{tpu_custom_call.1} parent=11 // pred_fallthru
          _
      $region12: #{tpu_custom_call.1} parent=5 // pred_fallthru
        _
      %p160 = scmp.lt.s32.totalorder %s19, 2
      // Predicated region
      $region21: #{tpu_custom_call.1} parent=5 // pred_check
        %p161 = pneg %p160
      $region22: #{tpu_custom_call.1} parent=5 // pred_check_branch
        %163 = sbr.rel (%p161) target = $region24
      $region23: #{tpu_custom_call.1} parent=5 // pred_region
        // Predicated region
        $region25: #{tpu_custom_call.1} parent=23 // pred_check
          %p164 = pneg %p39
        $region26: #{tpu_custom_call.1} parent=23 // pred_check_branch
          %166 = sbr.rel (%p164) target = $region28
        $region27: #{tpu_custom_call.1} parent=23 // pred_region
          %s167 = sand.u32 %s29, 1
          %s168 = scalar_lea.sflag [#allocation3], %s167
          %s169 = sand.u32 %s29, 1
          %s170 = smul.addr %s169, 384
          %s171 = scalar_lea.vmem [#allocation2], %s170
          %s172 = smul.u32 24, %s19
          %s174 = ssub.s32 6144, 6144
          %175 = vsyncadd %s168, %s174
          %s176 = smul.addr %s172, 2
          %s177 = smul.addr %s176, 128
          %s178 = scalar_lea.hbm %s0, %s177
          %s179 = sshll.u32 %s171, 4
          %s180 = int_to_ptr.vmem [resolvable:$true] %s179
          %185 = dma.hbm_to_vmem [thread:$0]  %s178, 6144, %s180, %s168, 256, 256, 16
        $region28: #{tpu_custom_call.1} parent=23 // pred_fallthru
          _
        // Predicated region
        $region29: #{tpu_custom_call.1} parent=23 // pred_check
          %p186 = pneg %p65
        $region30: #{tpu_custom_call.1} parent=23 // pred_check_branch
          %188 = sbr.rel (%p186) target = $region32
        $region31: #{tpu_custom_call.1} parent=23 // pred_region
          %s189 = sand.u32 %s55, 1
          %s190 = scalar_lea.sflag [#allocation6], %s189
          %s191 = sand.u32 %s55, 1
          %s192 = smul.addr %s191, 384
          %s193 = scalar_lea.vmem [#allocation5], %s192
          %s194 = smul.u32 24, %s19
          %s196 = ssub.s32 6144, 6144
          %197 = vsyncadd %s190, %s196
          %s198 = smul.addr %s194, 2
          %s199 = smul.addr %s198, 128
          %s200 = scalar_lea.hbm %s1, %s199
          %s201 = sshll.u32 %s193, 4
          %s202 = int_to_ptr.vmem [resolvable:$true] %s201
          %207 = dma.hbm_to_vmem [thread:$0]  %s200, 6144, %s202, %s190, 256, 256, 16
        $region32: #{tpu_custom_call.1} parent=23 // pred_fallthru
          _
      $region24: #{tpu_custom_call.1} parent=5 // pred_fallthru
        _
      %p208 = scmp.le.s32.totalorder 1, %s19
      %p209 = scmp.lt.s32.totalorder %s19, 3
      %p210 = pnand %p208, %p209
      %p211 = pneg %p210
      // Predicated region
      $region33: #{tpu_custom_call.1} parent=5 // pred_check
        _
      $region34: #{tpu_custom_call.1} parent=5 // pred_check_branch
        %213 = sbr.rel (%p210) target = $region36
      $region35: #{tpu_custom_call.1} parent=5 // pred_region
        %s214 = ssub.s32 %s19, 1
        %s215 = sand.u32 %s32, 1
        %s216 = scalar_lea.sflag [#allocation3], %s215
        %s217 = sand.u32 %s32, 1
        %s218 = smul.addr %s217, 384
        %s219 = scalar_lea.vmem [#allocation2], %s218
        // Predicated region
        $region37: #{tpu_custom_call.1} parent=35 // pred_check
          %p220 = pneg %p45
        $region38: #{tpu_custom_call.1} parent=35 // pred_check_branch
          %222 = sbr.rel (%p220) target = $region40
        $region39: #{tpu_custom_call.1} parent=35 // pred_region
          %223 = dma.done %s216, 6144
        $region40: #{tpu_custom_call.1} parent=35 // pred_fallthru
          _
        %s224 = sand.u32 %s58, 1
        %s225 = scalar_lea.sflag [#allocation6], %s224
        %s226 = sand.u32 %s58, 1
        %s227 = smul.addr %s226, 384
        %s228 = scalar_lea.vmem [#allocation5], %s227
        // Predicated region
        $region41: #{tpu_custom_call.1} parent=35 // pred_check
          %p229 = pneg %p71
        $region42: #{tpu_custom_call.1} parent=35 // pred_check_branch
          %231 = sbr.rel (%p229) target = $region44
        $region43: #{tpu_custom_call.1} parent=35 // pred_region
          %232 = dma.done %s225, 6144
        $region44: #{tpu_custom_call.1} parent=35 // pred_fallthru
          _
        %s233 = sand.u32 %s32, 1
        %s234 = scalar_lea.sflag [#allocation3], %s233
        %s235 = sand.u32 %s32, 1
        %s236 = smul.addr %s235, 384
        %s237 = scalar_lea.vmem [#allocation2], %s236
        %p238 = pneg %p45
        %p239 = pneg %p42
        %s240 = sand.u32 %s58, 1
        %s241 = scalar_lea.sflag [#allocation6], %s240
        %s242 = sand.u32 %s58, 1
        %s243 = smul.addr %s242, 384
        %s244 = scalar_lea.vmem [#allocation5], %s243
        %p245 = pneg %p71
        %p246 = pneg %p68
        %p247 = pneg %p92
        %p248 = pneg %p89
        %p249 = pneg %p113
        %p250 = pneg %p110
        %p251 = pneg %p139
        %p252 = pneg %p136
        %s253 = sand.u32 %s126, 1
        %s254 = scalar_lea.sflag [#allocation4], %s253
        %s255 = sand.u32 %s126, 1
        %s256 = smul.addr %s255, 384
        %s257 = scalar_lea.vmem [#allocation7], %s256
        %s258 = smul.u32 24, %s24
        %s259 = smul.u32 24, %s24
        %s260 = smul.u32 24, %s24
        %v261 = vld [vmem:[%s219] sm:$0xff]
        %v262 = vld [vmem:[%s219 + $0x8] sm:$0xff]
        %v263 = vld [vmem:[%s219 + $0x10] sm:$0xff]
        %v264 = vld [vmem:[%s219 + $0x18] sm:$0xff]
        %v265 = vld [vmem:[%s219 + $0x20] sm:$0xff]
        %v266 = vld [vmem:[%s219 + $0x28] sm:$0xff]
        %v267 = vld [vmem:[%s219 + $0x30] sm:$0xff]
        %v268 = vld [vmem:[%s219 + $0x38] sm:$0xff]
        %v269 = vld [vmem:[%s219 + $0x40] sm:$0xff]
        %v270 = vld [vmem:[%s219 + $0x48] sm:$0xff]
        %v271 = vld [vmem:[%s219 + $0x50] sm:$0xff]
        %v272 = vld [vmem:[%s219 + $0x58] sm:$0xff]
        %v273 = vld [vmem:[%s219 + $0x60] sm:$0xff]
        %v274 = vld [vmem:[%s219 + $0x68] sm:$0xff]
        %v275 = vld [vmem:[%s219 + $0x70] sm:$0xff]
        %v276 = vld [vmem:[%s219 + $0x78] sm:$0xff]
        %v277 = vld [vmem:[%s219 + $0x80] sm:$0xff]
        %v278 = vld [vmem:[%s219 + $0x88] sm:$0xff]
        %v279 = vld [vmem:[%s219 + $0x90] sm:$0xff]
        %v280 = vld [vmem:[%s219 + $0x98] sm:$0xff]
        %v281 = vld [vmem:[%s219 + $0xa0] sm:$0xff]
        %v282 = vld [vmem:[%s219 + $0xa8] sm:$0xff]
        %v283 = vld [vmem:[%s219 + $0xb0] sm:$0xff]
        %v284 = vld [vmem:[%s219 + $0xb8] sm:$0xff]
        %v285 = vld [vmem:[%s219 + $0xc0] sm:$0xff]
        %v286 = vld [vmem:[%s219 + $0xc8] sm:$0xff]
        %v287 = vld [vmem:[%s219 + $0xd0] sm:$0xff]
        %v288 = vld [vmem:[%s219 + $0xd8] sm:$0xff]
        %v289 = vld [vmem:[%s219 + $0xe0] sm:$0xff]
        %v290 = vld [vmem:[%s219 + $0xe8] sm:$0xff]
        %v291 = vld [vmem:[%s219 + $0xf0] sm:$0xff]
        %v292 = vld [vmem:[%s219 + $0xf8] sm:$0xff]
        %v293 = vld [vmem:[%s219 + $0x100] sm:$0xff]
        %v294 = vld [vmem:[%s219 + $0x108] sm:$0xff]
        %v295 = vld [vmem:[%s219 + $0x110] sm:$0xff]
        %v296 = vld [vmem:[%s219 + $0x118] sm:$0xff]
        %v297 = vld [vmem:[%s219 + $0x120] sm:$0xff]
        %v298 = vld [vmem:[%s219 + $0x128] sm:$0xff]
        %v299 = vld [vmem:[%s219 + $0x130] sm:$0xff]
        %v300 = vld [vmem:[%s219 + $0x138] sm:$0xff]
        %v301 = vld [vmem:[%s219 + $0x140] sm:$0xff]
        %v302 = vld [vmem:[%s219 + $0x148] sm:$0xff]
        %v303 = vld [vmem:[%s219 + $0x150] sm:$0xff]
        %v304 = vld [vmem:[%s219 + $0x158] sm:$0xff]
        %v305 = vld [vmem:[%s219 + $0x160] sm:$0xff]
        %v306 = vld [vmem:[%s219 + $0x168] sm:$0xff]
        %v307 = vld [vmem:[%s219 + $0x170] sm:$0xff]
        %v308 = vld [vmem:[%s219 + $0x178] sm:$0xff]
        %v309 = vld [vmem:[%s228] sm:$0xff]
        %v310 = vld [vmem:[%s228 + $0x8] sm:$0xff]
        %v311 = vld [vmem:[%s228 + $0x10] sm:$0xff]
        %v312 = vld [vmem:[%s228 + $0x18] sm:$0xff]
        %v313 = vld [vmem:[%s228 + $0x20] sm:$0xff]
        %v314 = vld [vmem:[%s228 + $0x28] sm:$0xff]
        %v315 = vld [vmem:[%s228 + $0x30] sm:$0xff]
        %v316 = vld [vmem:[%s228 + $0x38] sm:$0xff]
        %v317 = vld [vmem:[%s228 + $0x40] sm:$0xff]
        %v318 = vld [vmem:[%s228 + $0x48] sm:$0xff]
        %v319 = vld [vmem:[%s228 + $0x50] sm:$0xff]
        %v320 = vld [vmem:[%s228 + $0x58] sm:$0xff]
        %v321 = vld [vmem:[%s228 + $0x60] sm:$0xff]
        %v322 = vld [vmem:[%s228 + $0x68] sm:$0xff]
        %v323 = vld [vmem:[%s228 + $0x70] sm:$0xff]
        %v324 = vld [vmem:[%s228 + $0x78] sm:$0xff]
        %v325 = vld [vmem:[%s228 + $0x80] sm:$0xff]
        %v326 = vld [vmem:[%s228 + $0x88] sm:$0xff]
        %v327 = vld [vmem:[%s228 + $0x90] sm:$0xff]
        %v328 = vld [vmem:[%s228 + $0x98] sm:$0xff]
        %v329 = vld [vmem:[%s228 + $0xa0] sm:$0xff]
        %v330 = vld [vmem:[%s228 + $0xa8] sm:$0xff]
        %v331 = vld [vmem:[%s228 + $0xb0] sm:$0xff]
        %v332 = vld [vmem:[%s228 + $0xb8] sm:$0xff]
        %v333 = vld [vmem:[%s228 + $0xc0] sm:$0xff]
        %v334 = vld [vmem:[%s228 + $0xc8] sm:$0xff]
        %v335 = vld [vmem:[%s228 + $0xd0] sm:$0xff]
        %v336 = vld [vmem:[%s228 + $0xd8] sm:$0xff]
        %v337 = vld [vmem:[%s228 + $0xe0] sm:$0xff]
        %v338 = vld [vmem:[%s228 + $0xe8] sm:$0xff]
        %v339 = vld [vmem:[%s228 + $0xf0] sm:$0xff]
        %v340 = vld [vmem:[%s228 + $0xf8] sm:$0xff]
        %v341 = vld [vmem:[%s228 + $0x100] sm:$0xff]
        %v342 = vld [vmem:[%s228 + $0x108] sm:$0xff]
        %v343 = vld [vmem:[%s228 + $0x110] sm:$0xff]
        %v344 = vld [vmem:[%s228 + $0x118] sm:$0xff]
        %v345 = vld [vmem:[%s228 + $0x120] sm:$0xff]
        %v346 = vld [vmem:[%s228 + $0x128] sm:$0xff]
        %v347 = vld [vmem:[%s228 + $0x130] sm:$0xff]
        %v348 = vld [vmem:[%s228 + $0x138] sm:$0xff]
        %v349 = vld [vmem:[%s228 + $0x140] sm:$0xff]
        %v350 = vld [vmem:[%s228 + $0x148] sm:$0xff]
        %v351 = vld [vmem:[%s228 + $0x150] sm:$0xff]
        %v352 = vld [vmem:[%s228 + $0x158] sm:$0xff]
        %v353 = vld [vmem:[%s228 + $0x160] sm:$0xff]
        %v354 = vld [vmem:[%s228 + $0x168] sm:$0xff]
        %v355 = vld [vmem:[%s228 + $0x170] sm:$0xff]
        %v356 = vld [vmem:[%s228 + $0x178] sm:$0xff]
        %v357 = vadd.f32 %v261, %v309
        %v358 = vadd.f32 %v262, %v310
        %v359 = vadd.f32 %v263, %v311
        %v360 = vadd.f32 %v264, %v312
        %v361 = vadd.f32 %v265, %v313
        %v362 = vadd.f32 %v266, %v314
        %v363 = vadd.f32 %v267, %v315
        %v364 = vadd.f32 %v268, %v316
        %v365 = vadd.f32 %v269, %v317
        %v366 = vadd.f32 %v270, %v318
        %v367 = vadd.f32 %v271, %v319
        %v368 = vadd.f32 %v272, %v320
        %v369 = vadd.f32 %v273, %v321
        %v370 = vadd.f32 %v274, %v322
        %v371 = vadd.f32 %v275, %v323
        %v372 = vadd.f32 %v276, %v324
        %v373 = vadd.f32 %v277, %v325
        %v374 = vadd.f32 %v278, %v326
        %v375 = vadd.f32 %v279, %v327
        %v376 = vadd.f32 %v280, %v328
        %v377 = vadd.f32 %v281, %v329
        %v378 = vadd.f32 %v282, %v330
        %v379 = vadd.f32 %v283, %v331
        %v380 = vadd.f32 %v284, %v332
        %v381 = vadd.f32 %v285, %v333
        %v382 = vadd.f32 %v286, %v334
        %v383 = vadd.f32 %v287, %v335
        %v384 = vadd.f32 %v288, %v336
        %v385 = vadd.f32 %v289, %v337
        %v386 = vadd.f32 %v290, %v338
        %v387 = vadd.f32 %v291, %v339
        %v388 = vadd.f32 %v292, %v340
        %v389 = vadd.f32 %v293, %v341
        %v390 = vadd.f32 %v294, %v342
        %v391 = vadd.f32 %v295, %v343
        %v392 = vadd.f32 %v296, %v344
        %v393 = vadd.f32 %v297, %v345
        %v394 = vadd.f32 %v298, %v346
        %v395 = vadd.f32 %v299, %v347
        %v396 = vadd.f32 %v300, %v348
        %v397 = vadd.f32 %v301, %v349
        %v398 = vadd.f32 %v302, %v350
        %v399 = vadd.f32 %v303, %v351
        %v400 = vadd.f32 %v304, %v352
        %v401 = vadd.f32 %v305, %v353
        %v402 = vadd.f32 %v306, %v354
        %v403 = vadd.f32 %v307, %v355
        %v404 = vadd.f32 %v308, %v356
        %v405 = vadd.f32 %v357, %v358
        %406 = vadd.xlane.f32.xlu0 %v405
        %v407 = vpop.xlane.xlu0 %406
        %v408 = vadd.f32 %v359, %v360
        %409 = vadd.xlane.f32.xlu0 %v408
        %v410 = vpop.xlane.xlu0 %409
        %v411 = vadd.f32 %v361, %v362
        %412 = vadd.xlane.f32.xlu0 %v411
        %v413 = vpop.xlane.xlu0 %412
        %v414 = vadd.f32 %v363, %v364
        %415 = vadd.xlane.f32.xlu0 %v414
        %v416 = vpop.xlane.xlu0 %415
        %v417 = vadd.f32 %v365, %v366
        %418 = vadd.xlane.f32.xlu0 %v417
        %v419 = vpop.xlane.xlu0 %418
        %v420 = vadd.f32 %v367, %v368
        %421 = vadd.xlane.f32.xlu0 %v420
        %v422 = vpop.xlane.xlu0 %421
        %v423 = vadd.f32 %v369, %v370
        %424 = vadd.xlane.f32.xlu0 %v423
        %v425 = vpop.xlane.xlu0 %424
        %v426 = vadd.f32 %v371, %v372
        %427 = vadd.xlane.f32.xlu0 %v426
        %v428 = vpop.xlane.xlu0 %427
        %v429 = vadd.f32 %v373, %v374
        %430 = vadd.xlane.f32.xlu0 %v429
        %v431 = vpop.xlane.xlu0 %430
        %v432 = vadd.f32 %v375, %v376
        %433 = vadd.xlane.f32.xlu0 %v432
        %v434 = vpop.xlane.xlu0 %433
        %v435 = vadd.f32 %v377, %v378
        %436 = vadd.xlane.f32.xlu0 %v435
        %v437 = vpop.xlane.xlu0 %436
        %v438 = vadd.f32 %v379, %v380
        %439 = vadd.xlane.f32.xlu0 %v438
        %v440 = vpop.xlane.xlu0 %439
        %v441 = vadd.f32 %v381, %v382
        %442 = vadd.xlane.f32.xlu0 %v441
        %v443 = vpop.xlane.xlu0 %442
        %v444 = vadd.f32 %v383, %v384
        %445 = vadd.xlane.f32.xlu0 %v444
        %v446 = vpop.xlane.xlu0 %445
        %v447 = vadd.f32 %v385, %v386
        %448 = vadd.xlane.f32.xlu0 %v447
        %v449 = vpop.xlane.xlu0 %448
        %v450 = vadd.f32 %v387, %v388
        %451 = vadd.xlane.f32.xlu0 %v450
        %v452 = vpop.xlane.xlu0 %451
        %v453 = vadd.f32 %v389, %v390
        %454 = vadd.xlane.f32.xlu0 %v453
        %v455 = vpop.xlane.xlu0 %454
        %v456 = vadd.f32 %v391, %v392
        %457 = vadd.xlane.f32.xlu0 %v456
        %v458 = vpop.xlane.xlu0 %457
        %v459 = vadd.f32 %v393, %v394
        %460 = vadd.xlane.f32.xlu0 %v459
        %v461 = vpop.xlane.xlu0 %460
        %v462 = vadd.f32 %v395, %v396
        %463 = vadd.xlane.f32.xlu0 %v462
        %v464 = vpop.xlane.xlu0 %463
        %v465 = vadd.f32 %v397, %v398
        %466 = vadd.xlane.f32.xlu0 %v465
        %v467 = vpop.xlane.xlu0 %466
        %v468 = vadd.f32 %v399, %v400
        %469 = vadd.xlane.f32.xlu0 %v468
        %v470 = vpop.xlane.xlu0 %469
        %v471 = vadd.f32 %v401, %v402
        %472 = vadd.xlane.f32.xlu0 %v471
        %v473 = vpop.xlane.xlu0 %472
        %v474 = vadd.f32 %v403, %v404
        %475 = vadd.xlane.f32.xlu0 %v474
        %v476 = vpop.xlane.xlu0 %475
        %v477 = vmul.f32 %v407, 0.00390625
        %v478 = vmul.f32 %v410, 0.00390625
        %v479 = vmul.f32 %v413, 0.00390625
        %v480 = vmul.f32 %v416, 0.00390625
        %v481 = vmul.f32 %v419, 0.00390625
        %v482 = vmul.f32 %v422, 0.00390625
        %v483 = vmul.f32 %v425, 0.00390625
        %v484 = vmul.f32 %v428, 0.00390625
        %v485 = vmul.f32 %v431, 0.00390625
        %v486 = vmul.f32 %v434, 0.00390625
        %v487 = vmul.f32 %v437, 0.00390625
        %v488 = vmul.f32 %v440, 0.00390625
        %v489 = vmul.f32 %v443, 0.00390625
        %v490 = vmul.f32 %v446, 0.00390625
        %v491 = vmul.f32 %v449, 0.00390625
        %v492 = vmul.f32 %v452, 0.00390625
        %v493 = vmul.f32 %v455, 0.00390625
        %v494 = vmul.f32 %v458, 0.00390625
        %v495 = vmul.f32 %v461, 0.00390625
        %v496 = vmul.f32 %v464, 0.00390625
        %v497 = vmul.f32 %v467, 0.00390625
        %v498 = vmul.f32 %v470, 0.00390625
        %v499 = vmul.f32 %v473, 0.00390625
        %v500 = vmul.f32 %v476, 0.00390625
        %v501 = vsub.f32 %v357, %v477
        %v502 = vsub.f32 %v358, %v477
        %v503 = vsub.f32 %v359, %v478
        %v504 = vsub.f32 %v360, %v478
        %v505 = vsub.f32 %v361, %v479
        %v506 = vsub.f32 %v362, %v479
        %v507 = vsub.f32 %v363, %v480
        %v508 = vsub.f32 %v364, %v480
        %v509 = vsub.f32 %v365, %v481
        %v510 = vsub.f32 %v366, %v481
        %v511 = vsub.f32 %v367, %v482
        %v512 = vsub.f32 %v368, %v482
        %v513 = vsub.f32 %v369, %v483
        %v514 = vsub.f32 %v370, %v483
        %v515 = vsub.f32 %v371, %v484
        %v516 = vsub.f32 %v372, %v484
        %v517 = vsub.f32 %v373, %v485
        %v518 = vsub.f32 %v374, %v485
        %v519 = vsub.f32 %v375, %v486
        %v520 = vsub.f32 %v376, %v486
        %v521 = vsub.f32 %v377, %v487
        %v522 = vsub.f32 %v378, %v487
        %v523 = vsub.f32 %v379, %v488
        %v524 = vsub.f32 %v380, %v488
        %v525 = vsub.f32 %v381, %v489
        %v526 = vsub.f32 %v382, %v489
        %v527 = vsub.f32 %v383, %v490
        %v528 = vsub.f32 %v384, %v490
        %v529 = vsub.f32 %v385, %v491
        %v530 = vsub.f32 %v386, %v491
        %v531 = vsub.f32 %v387, %v492
        %v532 = vsub.f32 %v388, %v492
        %v533 = vsub.f32 %v389, %v493
        %v534 = vsub.f32 %v390, %v493
        %v535 = vsub.f32 %v391, %v494
        %v536 = vsub.f32 %v392, %v494
        %v537 = vsub.f32 %v393, %v495
        %v538 = vsub.f32 %v394, %v495
        %v539 = vsub.f32 %v395, %v496
        %v540 = vsub.f32 %v396, %v496
        %v541 = vsub.f32 %v397, %v497
        %v542 = vsub.f32 %v398, %v497
        %v543 = vsub.f32 %v399, %v498
        %v544 = vsub.f32 %v400, %v498
        %v545 = vsub.f32 %v401, %v499
        %v546 = vsub.f32 %v402, %v499
        %v547 = vsub.f32 %v403, %v500
        %v548 = vsub.f32 %v404, %v500
        %v549 = vmul.f32 %v501, %v501
        %v550 = vmul.f32 %v502, %v502
        %v551 = vmul.f32 %v503, %v503
        %v552 = vmul.f32 %v504, %v504
        %v553 = vmul.f32 %v505, %v505
        %v554 = vmul.f32 %v506, %v506
        %v555 = vmul.f32 %v507, %v507
        %v556 = vmul.f32 %v508, %v508
        %v557 = vmul.f32 %v509, %v509
        %v558 = vmul.f32 %v510, %v510
        %v559 = vmul.f32 %v511, %v511
        %v560 = vmul.f32 %v512, %v512
        %v561 = vmul.f32 %v513, %v513
        %v562 = vmul.f32 %v514, %v514
        %v563 = vmul.f32 %v515, %v515
        %v564 = vmul.f32 %v516, %v516
        %v565 = vmul.f32 %v517, %v517
        %v566 = vmul.f32 %v518, %v518
        %v567 = vmul.f32 %v519, %v519
        %v568 = vmul.f32 %v520, %v520
        %v569 = vmul.f32 %v521, %v521
        %v570 = vmul.f32 %v522, %v522
        %v571 = vmul.f32 %v523, %v523
        %v572 = vmul.f32 %v524, %v524
        %v573 = vmul.f32 %v525, %v525
        %v574 = vmul.f32 %v526, %v526
        %v575 = vmul.f32 %v527, %v527
        %v576 = vmul.f32 %v528, %v528
        %v577 = vmul.f32 %v529, %v529
        %v578 = vmul.f32 %v530, %v530
        %v579 = vmul.f32 %v531, %v531
        %v580 = vmul.f32 %v532, %v532
        %v581 = vmul.f32 %v533, %v533
        %v582 = vmul.f32 %v534, %v534
        %v583 = vmul.f32 %v535, %v535
        %v584 = vmul.f32 %v536, %v536
        %v585 = vmul.f32 %v537, %v537
        %v586 = vmul.f32 %v538, %v538
        %v587 = vmul.f32 %v539, %v539
        %v588 = vmul.f32 %v540, %v540
        %v589 = vmul.f32 %v541, %v541
        %v590 = vmul.f32 %v542, %v542
        %v591 = vmul.f32 %v543, %v543
        %v592 = vmul.f32 %v544, %v544
        %v593 = vmul.f32 %v545, %v545
        %v594 = vmul.f32 %v546, %v546
        %v595 = vmul.f32 %v547, %v547
        %v596 = vmul.f32 %v548, %v548
        %v597 = vadd.f32 %v549, %v550
        %598 = vadd.xlane.f32.xlu0 %v597
        %v599 = vpop.xlane.xlu0 %598
        %v600 = vadd.f32 %v551, %v552
        %601 = vadd.xlane.f32.xlu0 %v600
        %v602 = vpop.xlane.xlu0 %601
        %v603 = vadd.f32 %v553, %v554
        %604 = vadd.xlane.f32.xlu0 %v603
        %v605 = vpop.xlane.xlu0 %604
        %v606 = vadd.f32 %v555, %v556
        %607 = vadd.xlane.f32.xlu0 %v606
        %v608 = vpop.xlane.xlu0 %607
        %v609 = vadd.f32 %v557, %v558
        %610 = vadd.xlane.f32.xlu0 %v609
        %v611 = vpop.xlane.xlu0 %610
        %v612 = vadd.f32 %v559, %v560
        %613 = vadd.xlane.f32.xlu0 %v612
        %v614 = vpop.xlane.xlu0 %613
        %v615 = vadd.f32 %v561, %v562
        %616 = vadd.xlane.f32.xlu0 %v615
        %v617 = vpop.xlane.xlu0 %616
        %v618 = vadd.f32 %v563, %v564
        %619 = vadd.xlane.f32.xlu0 %v618
        %v620 = vpop.xlane.xlu0 %619
        %v621 = vadd.f32 %v565, %v566
        %622 = vadd.xlane.f32.xlu0 %v621
        %v623 = vpop.xlane.xlu0 %622
        %v624 = vadd.f32 %v567, %v568
        %625 = vadd.xlane.f32.xlu0 %v624
        %v626 = vpop.xlane.xlu0 %625
        %v627 = vadd.f32 %v569, %v570
        %628 = vadd.xlane.f32.xlu0 %v627
        %v629 = vpop.xlane.xlu0 %628
        %v630 = vadd.f32 %v571, %v572
        %631 = vadd.xlane.f32.xlu0 %v630
        %v632 = vpop.xlane.xlu0 %631
        %v633 = vadd.f32 %v573, %v574
        %634 = vadd.xlane.f32.xlu0 %v633
        %v635 = vpop.xlane.xlu0 %634
        %v636 = vadd.f32 %v575, %v576
        %637 = vadd.xlane.f32.xlu0 %v636
        %v638 = vpop.xlane.xlu0 %637
        %v639 = vadd.f32 %v577, %v578
        %640 = vadd.xlane.f32.xlu0 %v639
        %v641 = vpop.xlane.xlu0 %640
        %v642 = vadd.f32 %v579, %v580
        %643 = vadd.xlane.f32.xlu0 %v642
        %v644 = vpop.xlane.xlu0 %643
        %v645 = vadd.f32 %v581, %v582
        %646 = vadd.xlane.f32.xlu0 %v645
        %v647 = vpop.xlane.xlu0 %646
        %v648 = vadd.f32 %v583, %v584
        %649 = vadd.xlane.f32.xlu0 %v648
        %v650 = vpop.xlane.xlu0 %649
        %v651 = vadd.f32 %v585, %v586
        %652 = vadd.xlane.f32.xlu0 %v651
        %v653 = vpop.xlane.xlu0 %652
        %v654 = vadd.f32 %v587, %v588
        %655 = vadd.xlane.f32.xlu0 %v654
        %v656 = vpop.xlane.xlu0 %655
        %v657 = vadd.f32 %v589, %v590
        %658 = vadd.xlane.f32.xlu0 %v657
        %v659 = vpop.xlane.xlu0 %658
        %v660 = vadd.f32 %v591, %v592
        %661 = vadd.xlane.f32.xlu0 %v660
        %v662 = vpop.xlane.xlu0 %661
        %v663 = vadd.f32 %v593, %v594
        %664 = vadd.xlane.f32.xlu0 %v663
        %v665 = vpop.xlane.xlu0 %664
        %v666 = vadd.f32 %v595, %v596
        %667 = vadd.xlane.f32.xlu0 %v666
        %v668 = vpop.xlane.xlu0 %667
        %v669 = vmul.f32 %v599, 0.00390625
        %v670 = vmul.f32 %v602, 0.00390625
        %v671 = vmul.f32 %v605, 0.00390625
        %v672 = vmul.f32 %v608, 0.00390625
        %v673 = vmul.f32 %v611, 0.00390625
        %v674 = vmul.f32 %v614, 0.00390625
        %v675 = vmul.f32 %v617, 0.00390625
        %v676 = vmul.f32 %v620, 0.00390625
        %v677 = vmul.f32 %v623, 0.00390625
        %v678 = vmul.f32 %v626, 0.00390625
        %v679 = vmul.f32 %v629, 0.00390625
        %v680 = vmul.f32 %v632, 0.00390625
        %v681 = vmul.f32 %v635, 0.00390625
        %v682 = vmul.f32 %v638, 0.00390625
        %v683 = vmul.f32 %v641, 0.00390625
        %v684 = vmul.f32 %v644, 0.00390625
        %v685 = vmul.f32 %v647, 0.00390625
        %v686 = vmul.f32 %v650, 0.00390625
        %v687 = vmul.f32 %v653, 0.00390625
        %v688 = vmul.f32 %v656, 0.00390625
        %v689 = vmul.f32 %v659, 0.00390625
        %v690 = vmul.f32 %v662, 0.00390625
        %v691 = vmul.f32 %v665, 0.00390625
        %v692 = vmul.f32 %v668, 0.00390625
        %v693 = vadd.f32 %v669, 1e-12
        %v694 = vadd.f32 %v670, 1e-12
        %v695 = vadd.f32 %v671, 1e-12
        %v696 = vadd.f32 %v672, 1e-12
        %v697 = vadd.f32 %v673, 1e-12
        %v698 = vadd.f32 %v674, 1e-12
        %v699 = vadd.f32 %v675, 1e-12
        %v700 = vadd.f32 %v676, 1e-12
        %v701 = vadd.f32 %v677, 1e-12
        %v702 = vadd.f32 %v678, 1e-12
        %v703 = vadd.f32 %v679, 1e-12
        %v704 = vadd.f32 %v680, 1e-12
        %v705 = vadd.f32 %v681, 1e-12
        %v706 = vadd.f32 %v682, 1e-12
        %v707 = vadd.f32 %v683, 1e-12
        %v708 = vadd.f32 %v684, 1e-12
        %v709 = vadd.f32 %v685, 1e-12
        %v710 = vadd.f32 %v686, 1e-12
        %v711 = vadd.f32 %v687, 1e-12
        %v712 = vadd.f32 %v688, 1e-12
        %v713 = vadd.f32 %v689, 1e-12
        %v714 = vadd.f32 %v690, 1e-12
        %v715 = vadd.f32 %v691, 1e-12
        %v716 = vadd.f32 %v692, 1e-12
        %v717 = vrsqrt.pop %v693
        %v718 = vrsqrt.pop %v694
        %v719 = vrsqrt.pop %v695
        %v720 = vrsqrt.pop %v696
        %v721 = vrsqrt.pop %v697
        %v722 = vrsqrt.pop %v698
        %v723 = vrsqrt.pop %v699
        %v724 = vrsqrt.pop %v700
        %v725 = vrsqrt.pop %v701
        %v726 = vrsqrt.pop %v702
        %v727 = vrsqrt.pop %v703
        %v728 = vrsqrt.pop %v704
        %v729 = vrsqrt.pop %v705
        %v730 = vrsqrt.pop %v706
        %v731 = vrsqrt.pop %v707
        %v732 = vrsqrt.pop %v708
        %v733 = vrsqrt.pop %v709
        %v734 = vrsqrt.pop %v710
        %v735 = vrsqrt.pop %v711
        %v736 = vrsqrt.pop %v712
        %v737 = vrsqrt.pop %v713
        %v738 = vrsqrt.pop %v714
        %v739 = vrsqrt.pop %v715
        %v740 = vrsqrt.pop %v716
        %v741 = vld [vmem:[%s2] sm:$0x3]
        %v742 = vld [vmem:[%s3] sm:$0x3]
        %v743 = vmul.f32 %v501, %v717
        %v744 = vmul.f32 %v502, %v717
        %v745 = vmul.f32 %v503, %v718
        %v746 = vmul.f32 %v504, %v718
        %v747 = vmul.f32 %v505, %v719
        %v748 = vmul.f32 %v506, %v719
        %v749 = vmul.f32 %v507, %v720
        %v750 = vmul.f32 %v508, %v720
        %v751 = vmul.f32 %v509, %v721
        %v752 = vmul.f32 %v510, %v721
        %v753 = vmul.f32 %v511, %v722
        %v754 = vmul.f32 %v512, %v722
        %v755 = vmul.f32 %v513, %v723
        %v756 = vmul.f32 %v514, %v723
        %v757 = vmul.f32 %v515, %v724
        %v758 = vmul.f32 %v516, %v724
        %v759 = vmul.f32 %v517, %v725
        %v760 = vmul.f32 %v518, %v725
        %v761 = vmul.f32 %v519, %v726
        %v762 = vmul.f32 %v520, %v726
        %v763 = vmul.f32 %v521, %v727
        %v764 = vmul.f32 %v522, %v727
        %v765 = vmul.f32 %v523, %v728
        %v766 = vmul.f32 %v524, %v728
        %v767 = vmul.f32 %v525, %v729
        %v768 = vmul.f32 %v526, %v729
        %v769 = vmul.f32 %v527, %v730
        %v770 = vmul.f32 %v528, %v730
        %v771 = vmul.f32 %v529, %v731
        %v772 = vmul.f32 %v530, %v731
        %v773 = vmul.f32 %v531, %v732
        %v774 = vmul.f32 %v532, %v732
        %v775 = vmul.f32 %v533, %v733
        %v776 = vmul.f32 %v534, %v733
        %v777 = vmul.f32 %v535, %v734
        %v778 = vmul.f32 %v536, %v734
        %v779 = vmul.f32 %v537, %v735
        %v780 = vmul.f32 %v538, %v735
        %v781 = vmul.f32 %v539, %v736
        %v782 = vmul.f32 %v540, %v736
        %v783 = vmul.f32 %v541, %v737
        %v784 = vmul.f32 %v542, %v737
        %v785 = vmul.f32 %v543, %v738
        %v786 = vmul.f32 %v544, %v738
        %v787 = vmul.f32 %v545, %v739
        %v788 = vmul.f32 %v546, %v739
        %v789 = vmul.f32 %v547, %v740
        %v790 = vmul.f32 %v548, %v740
        %v792 = vlaneseq
        %v793 = vshrl.u32 %v792, 7
        %v794 = vsub.s32 0, %v793
        %v795 = vrot.slane %v741, %v794
        %v796 = vlaneseq
        %v797 = vshrl.u32 %v796, 7
        %v798 = vsub.s32 1, %v797
        %v799 = vrot.slane %v741, %v798
        %v802 = vmul.f32 %v743, %v795
        %v803 = vmul.f32 %v744, %v799
        %v804 = vmul.f32 %v745, %v795
        %v805 = vmul.f32 %v746, %v799
        %v806 = vmul.f32 %v747, %v795
        %v807 = vmul.f32 %v748, %v799
        %v808 = vmul.f32 %v749, %v795
        %v809 = vmul.f32 %v750, %v799
        %v810 = vmul.f32 %v751, %v795
        %v811 = vmul.f32 %v752, %v799
        %v812 = vmul.f32 %v753, %v795
        %v813 = vmul.f32 %v754, %v799
        %v814 = vmul.f32 %v755, %v795
        %v815 = vmul.f32 %v756, %v799
        %v816 = vmul.f32 %v757, %v795
        %v817 = vmul.f32 %v758, %v799
        %v818 = vmul.f32 %v759, %v795
        %v819 = vmul.f32 %v760, %v799
        %v820 = vmul.f32 %v761, %v795
        %v821 = vmul.f32 %v762, %v799
        %v822 = vmul.f32 %v763, %v795
        %v823 = vmul.f32 %v764, %v799
        %v824 = vmul.f32 %v765, %v795
        %v825 = vmul.f32 %v766, %v799
        %v826 = vmul.f32 %v767, %v795
        %v827 = vmul.f32 %v768, %v799
        %v828 = vmul.f32 %v769, %v795
        %v829 = vmul.f32 %v770, %v799
        %v830 = vmul.f32 %v771, %v795
        %v831 = vmul.f32 %v772, %v799
        %v832 = vmul.f32 %v773, %v795
        %v833 = vmul.f32 %v774, %v799
        %v834 = vmul.f32 %v775, %v795
        %v835 = vmul.f32 %v776, %v799
        %v836 = vmul.f32 %v777, %v795
        %v837 = vmul.f32 %v778, %v799
        %v838 = vmul.f32 %v779, %v795
        %v839 = vmul.f32 %v780, %v799
        %v840 = vmul.f32 %v781, %v795
        %v841 = vmul.f32 %v782, %v799
        %v842 = vmul.f32 %v783, %v795
        %v843 = vmul.f32 %v784, %v799
        %v844 = vmul.f32 %v785, %v795
        %v845 = vmul.f32 %v786, %v799
        %v846 = vmul.f32 %v787, %v795
        %v847 = vmul.f32 %v788, %v799
        %v848 = vmul.f32 %v789, %v795
        %v849 = vmul.f32 %v790, %v799
        %v851 = vlaneseq
        %v852 = vshrl.u32 %v851, 7
        %v853 = vsub.s32 0, %v852
        %v854 = vrot.slane %v742, %v853
        %v855 = vlaneseq
        %v856 = vshrl.u32 %v855, 7
        %v857 = vsub.s32 1, %v856
        %v858 = vrot.slane %v742, %v857
        %v861 = vadd.f32 %v802, %v854
        %v862 = vadd.f32 %v803, %v858
        %v863 = vadd.f32 %v804, %v854
        %v864 = vadd.f32 %v805, %v858
        %v865 = vadd.f32 %v806, %v854
        %v866 = vadd.f32 %v807, %v858
        %v867 = vadd.f32 %v808, %v854
        %v868 = vadd.f32 %v809, %v858
        %v869 = vadd.f32 %v810, %v854
        %v870 = vadd.f32 %v811, %v858
        %v871 = vadd.f32 %v812, %v854
        %v872 = vadd.f32 %v813, %v858
        %v873 = vadd.f32 %v814, %v854
        %v874 = vadd.f32 %v815, %v858
        %v875 = vadd.f32 %v816, %v854
        %v876 = vadd.f32 %v817, %v858
        %v877 = vadd.f32 %v818, %v854
        %v878 = vadd.f32 %v819, %v858
        %v879 = vadd.f32 %v820, %v854
        %v880 = vadd.f32 %v821, %v858
        %v881 = vadd.f32 %v822, %v854
        %v882 = vadd.f32 %v823, %v858
        %v883 = vadd.f32 %v824, %v854
        %v884 = vadd.f32 %v825, %v858
        %v885 = vadd.f32 %v826, %v854
        %v886 = vadd.f32 %v827, %v858
        %v887 = vadd.f32 %v828, %v854
        %v888 = vadd.f32 %v829, %v858
        %v889 = vadd.f32 %v830, %v854
        %v890 = vadd.f32 %v831, %v858
        %v891 = vadd.f32 %v832, %v854
        %v892 = vadd.f32 %v833, %v858
        %v893 = vadd.f32 %v834, %v854
        %v894 = vadd.f32 %v835, %v858
        %v895 = vadd.f32 %v836, %v854
        %v896 = vadd.f32 %v837, %v858
        %v897 = vadd.f32 %v838, %v854
        %v898 = vadd.f32 %v839, %v858
        %v899 = vadd.f32 %v840, %v854
        %v900 = vadd.f32 %v841, %v858
        %v901 = vadd.f32 %v842, %v854
        %v902 = vadd.f32 %v843, %v858
        %v903 = vadd.f32 %v844, %v854
        %v904 = vadd.f32 %v845, %v858
        %v905 = vadd.f32 %v846, %v854
        %v906 = vadd.f32 %v847, %v858
        %v907 = vadd.f32 %v848, %v854
        %v908 = vadd.f32 %v849, %v858
        %909 = vst [vmem:[%s257] sm:$0xff] %v861
        %910 = vst [vmem:[%s257 + $0x8] sm:$0xff] %v862
        %911 = vst [vmem:[%s257 + $0x10] sm:$0xff] %v863
        %912 = vst [vmem:[%s257 + $0x18] sm:$0xff] %v864
        %913 = vst [vmem:[%s257 + $0x20] sm:$0xff] %v865
        %914 = vst [vmem:[%s257 + $0x28] sm:$0xff] %v866
        %915 = vst [vmem:[%s257 + $0x30] sm:$0xff] %v867
        %916 = vst [vmem:[%s257 + $0x38] sm:$0xff] %v868
        %917 = vst [vmem:[%s257 + $0x40] sm:$0xff] %v869
        %918 = vst [vmem:[%s257 + $0x48] sm:$0xff] %v870
        %919 = vst [vmem:[%s257 + $0x50] sm:$0xff] %v871
        %920 = vst [vmem:[%s257 + $0x58] sm:$0xff] %v872
        %921 = vst [vmem:[%s257 + $0x60] sm:$0xff] %v873
        %922 = vst [vmem:[%s257 + $0x68] sm:$0xff] %v874
        %923 = vst [vmem:[%s257 + $0x70] sm:$0xff] %v875
        %924 = vst [vmem:[%s257 + $0x78] sm:$0xff] %v876
        %925 = vst [vmem:[%s257 + $0x80] sm:$0xff] %v877
        %926 = vst [vmem:[%s257 + $0x88] sm:$0xff] %v878
        %927 = vst [vmem:[%s257 + $0x90] sm:$0xff] %v879
        %928 = vst [vmem:[%s257 + $0x98] sm:$0xff] %v880
        %929 = vst [vmem:[%s257 + $0xa0] sm:$0xff] %v881
        %930 = vst [vmem:[%s257 + $0xa8] sm:$0xff] %v882
        %931 = vst [vmem:[%s257 + $0xb0] sm:$0xff] %v883
        %932 = vst [vmem:[%s257 + $0xb8] sm:$0xff] %v884
        %933 = vst [vmem:[%s257 + $0xc0] sm:$0xff] %v885
        %934 = vst [vmem:[%s257 + $0xc8] sm:$0xff] %v886
        %935 = vst [vmem:[%s257 + $0xd0] sm:$0xff] %v887
        %936 = vst [vmem:[%s257 + $0xd8] sm:$0xff] %v888
        %937 = vst [vmem:[%s257 + $0xe0] sm:$0xff] %v889
        %938 = vst [vmem:[%s257 + $0xe8] sm:$0xff] %v890
        %939 = vst [vmem:[%s257 + $0xf0] sm:$0xff] %v891
        %940 = vst [vmem:[%s257 + $0xf8] sm:$0xff] %v892
        %941 = vst [vmem:[%s257 + $0x100] sm:$0xff] %v893
        %942 = vst [vmem:[%s257 + $0x108] sm:$0xff] %v894
        %943 = vst [vmem:[%s257 + $0x110] sm:$0xff] %v895
        %944 = vst [vmem:[%s257 + $0x118] sm:$0xff] %v896
        %945 = vst [vmem:[%s257 + $0x120] sm:$0xff] %v897
        %946 = vst [vmem:[%s257 + $0x128] sm:$0xff] %v898
        %947 = vst [vmem:[%s257 + $0x130] sm:$0xff] %v899
        %948 = vst [vmem:[%s257 + $0x138] sm:$0xff] %v900
        %949 = vst [vmem:[%s257 + $0x140] sm:$0xff] %v901
        %950 = vst [vmem:[%s257 + $0x148] sm:$0xff] %v902
        %951 = vst [vmem:[%s257 + $0x150] sm:$0xff] %v903
        %952 = vst [vmem:[%s257 + $0x158] sm:$0xff] %v904
        %953 = vst [vmem:[%s257 + $0x160] sm:$0xff] %v905
        %954 = vst [vmem:[%s257 + $0x168] sm:$0xff] %v906
        %955 = vst [vmem:[%s257 + $0x170] sm:$0xff] %v907
        %956 = vst [vmem:[%s257 + $0x178] sm:$0xff] %v908
        %s957 = sand.u32 %s126, 1
        %s958 = scalar_lea.sflag [#allocation4], %s957
        %s959 = sand.u32 %s126, 1
        %s960 = smul.addr %s959, 384
        %s961 = scalar_lea.vmem [#allocation7], %s960
        // Predicated region
        $region45: #{tpu_custom_call.1} parent=35 // pred_check
          %p962 = pneg %p136
        $region46: #{tpu_custom_call.1} parent=35 // pred_check_branch
          %964 = sbr.rel (%p962) target = $region48
        $region47: #{tpu_custom_call.1} parent=35 // pred_region
          %s965 = smul.u32 24, %s24
          %s967 = ssub.s32 6144, 6144
          %968 = vsyncadd %s958, %s967
          %s969 = smul.addr %s965, 2
          %s970 = smul.addr %s969, 128
          %s971 = scalar_lea.hbm %s4, %s970
          %s972 = sshll.u32 %s961, 4
          %s973 = int_to_ptr.vmem [resolvable:$true] %s972
          %978 = dma.vmem_to_hbm [thread:$0]  %s973, 6144, %s971, %s958, 256, 256, 16
        $region48: #{tpu_custom_call.1} parent=35 // pred_fallthru
          _
      $region36: #{tpu_custom_call.1} parent=5 // pred_fallthru
        _
      %p979 = scmp.le.s32.totalorder 2, %s19
      // Predicated region
      $region49: #{tpu_custom_call.1} parent=5 // pred_check
        %p980 = pneg %p979
      $region50: #{tpu_custom_call.1} parent=5 // pred_check_branch
        %982 = sbr.rel (%p980) target = $region52
      $region51: #{tpu_custom_call.1} parent=5 // pred_region
        %s983 = ssub.s32 %s19, 2
        // Predicated region
        $region53: #{tpu_custom_call.1} parent=51 // pred_check
          %p984 = pneg %p142
        $region54: #{tpu_custom_call.1} parent=51 // pred_check_branch
          %986 = sbr.rel (%p984) target = $region56
        $region55: #{tpu_custom_call.1} parent=51 // pred_region
          %s987 = sand.u32 %s127, 1
          %s988 = scalar_lea.sflag [#allocation4], %s987
          %s989 = sand.u32 %s127, 1
          %s990 = smul.addr %s989, 384
          %s991 = scalar_lea.vmem [#allocation7], %s990
          %992 = dma.done %s988, 6144
        $region56: #{tpu_custom_call.1} parent=51 // pred_fallthru
          _
      $region52: #{tpu_custom_call.1} parent=5 // pred_fallthru
        _
    $region6: #{tpu_custom_call.1} parent=1 // loop_footer
      %s23 = sadd.s32 1, %s19
    $region7: #{tpu_custom_call.1} parent=1 // loop_footer_branch
      %18 = sbr.rel target = $region3
    $region8: #{tpu_custom_call.1} parent=1 // loop_exit
      _
    %993 = vsyncpa [#allocation3], 1
    %s994 = scalar_lea.sflag [#allocation3], 1
    %995 = vsyncpa %s994, 1
    %996 = vsyncpa [#allocation6], 1
    %s997 = scalar_lea.sflag [#allocation6], 1
    %998 = vsyncpa %s997, 1
    %999 = vsyncpa [#allocation4], 1
    %s1000 = scalar_lea.sflag [#allocation4], 1
    %1001 = vsyncpa %s1000, 1

</llo_original>
